<compile_context>
chip_gen: v7x
topology: tpu7x:2x2x1
jax: 0.10.0
libtpu: 0.0.40
codegen_flags: <defaults>
</compile_context>

<pallas_src>
import functools

import jax
import jax.numpy as jnp
from jax import lax
from jax.experimental import pallas as pl
from jax.experimental.pallas import tpu as pltpu

COMPUTE_DTYPE = jnp.bfloat16   # MXU operand dtype (f32 accumulation everywhere)
ACT_DTYPE = jnp.bfloat16       # inter-kernel activation dtype

# Tile targets (review: 512 row/col tiles to restore arithmetic intensity).
_TM, _TN, _TK = 512, 512, 512
_ROW_ALIGN = 16                # sublane multiple valid for bf16 (and a multiple of 8 for f32)


@functools.lru_cache(maxsize=None)
def _vmem_limit_bytes():
    """Generation-aware scoped-VMEM limit: ~48 MiB on 128 MiB parts, ~35 MiB on v7x."""
    cap = None
    try:
        info = pltpu.get_tpu_info()
        cap = getattr(info, "vmem_capacity_bytes", None)
    except Exception:
        cap = None
    if not cap:
        cap = 128 * 1024 * 1024
    return int(min(48 * 1024 * 1024, cap * 0.55))


def _tile(dim, target, align):
    """Largest tile <= target that divides `dim` and is a multiple of `align`.
    Falls back to the full dim (always legal under the (8,128) rule)."""
    if dim <= target:
        return dim
    t = (target // align) * align
    while t >= align:
        if dim % t == 0:
            return t
        t -= align
    return dim


def _row_tile(m, target=_TM):
    """Row (M) tile: full dim when small, otherwise a fixed aligned tile; the grid uses
    pl.cdiv and the remainder block is masked by Pallas (row-independent kernels only)."""
    if m <= target:
        return m
    return (target // _ROW_ALIGN) * _ROW_ALIGN


# ----------------------------- Pallas kernels ------------------------------

def _make_tiled_matmul_kernel(has_bias, has_residual, gelu):
    """Tiled x @ w (+ bias) (+ QuickGELU) (+ residual) with f32 accumulator over K."""

    def kernel(*refs):
        x_ref, w_ref = refs[0], refs[1]
        idx = 2
        b_ref = None
        r_ref = None
        if has_bias:
            b_ref = refs[idx]
            idx += 1
        if has_residual:
            r_ref = refs[idx]
            idx += 1
        o_ref, acc_ref = refs[idx], refs[idx + 1]

        k = pl.program_id(2)

        @pl.when(k == 0)
        def _init():
            acc_ref[...] = jnp.zeros_like(acc_ref)

        acc_ref[...] += jnp.dot(
            x_ref[...].astype(COMPUTE_DTYPE),
            w_ref[...].astype(COMPUTE_DTYPE),
            preferred_element_type=jnp.float32)

        @pl.when(k == pl.num_programs(2) - 1)
        def _finalize():
            h = acc_ref[...]
            if has_bias:
                h = h + b_ref[...].astype(jnp.float32)
            if gelu:
                h = h * jax.nn.sigmoid(1.702 * h)
            if has_residual:
                h = h + r_ref[...].astype(jnp.float32)
            o_ref[...] = h.astype(o_ref.dtype)

    return kernel


def _make_ln_linear_kernel(has_bias, gelu):
    """Fused LayerNorm(x) @ w (+ bias) (+ QuickGELU).

    LN statistics are computed in f32 only on the first N-tile (j == 0); the normalized
    rows are cached in a VMEM scratch and reused for the remaining N tiles."""

    def kernel(*refs):
        x_ref, g_ref, bln_ref, w_ref = refs[:4]
        idx = 4
        bias_ref = None
        if has_bias:
            bias_ref = refs[idx]
            idx += 1
        o_ref, xn_ref = refs[idx], refs[idx + 1]

        @pl.when(pl.program_id(1) == 0)
        def _compute_ln():
            x = x_ref[...].astype(jnp.float32)
            mean = jnp.mean(x, axis=-1, keepdims=True)
            var = jnp.mean(jnp.square(x - mean), axis=-1, keepdims=True)
            xn = (x - mean) * lax.rsqrt(var + 1e-5)
            xn = xn * g_ref[...].astype(jnp.float32) + bln_ref[...].astype(jnp.float32)
            xn_ref[...] = xn.astype(xn_ref.dtype)

        h = jnp.dot(xn_ref[...],
                    w_ref[...].astype(COMPUTE_DTYPE),
                    preferred_element_type=jnp.float32)
        if has_bias:
            h = h + bias_ref[...].astype(jnp.float32)
        if gelu:
            h = h * jax.nn.sigmoid(1.702 * h)
        o_ref[...] = h.astype(o_ref.dtype)

    return kernel


def _layernorm_kernel(x_ref, g_ref, b_ref, o_ref):
    # Standalone row-tiled LayerNorm (only ln_pre), f32 stats like the CLIP LayerNorm.
    x = x_ref[...].astype(jnp.float32)
    mean = jnp.mean(x, axis=-1, keepdims=True)
    var = jnp.mean(jnp.square(x - mean), axis=-1, keepdims=True)
    y = (x - mean) * lax.rsqrt(var + 1e-5)
    o_ref[...] = (y * g_ref[...] + b_ref[...]).astype(o_ref.dtype)


def _attention_kernel(qkv_ref, o_ref, w_ref, *, scale, heads, head_dim):
    """One batch element per grid step.

    qkv block: (1, L, 3*D) with columns [Q | K | V]; each head is a static lane slice,
    so no XLA (B, L, 3D) -> (B, H, L, hd) transpose is needed outside the kernel.
    Softmax statistics are f32 with an exact divide.  Per-head PV results are stored
    directly into lane slices of the (1, L, D) output (no concatenate relayout), and
    the head-averaged probabilities are accumulated in-kernel."""
    L = qkv_ref.shape[1]
    D = heads * head_dim

    w_acc = jnp.zeros((L, L), jnp.float32)
    for h in range(heads):
        lo = h * head_dim
        q = qkv_ref[0, :, lo:lo + head_dim].astype(COMPUTE_DTYPE)           # (L, hd)
        k = qkv_ref[0, :, D + lo:D + lo + head_dim].astype(COMPUTE_DTYPE)   # (L, hd)
        v = qkv_ref[0, :, 2 * D + lo:2 * D + lo + head_dim].astype(COMPUTE_DTYPE)

        # QK^T contracting the head dim (no explicit transpose), f32 scores.
        s = lax.dot_general(q, k, (((1,), (1,)), ((), ())),
                            preferred_element_type=jnp.float32) * scale     # (L, L)
        s = s - jnp.max(s, axis=-1, keepdims=True)
        p = jnp.exp(s)
        p = p / jnp.sum(p, axis=-1, keepdims=True)                          # exact divide
        w_acc = w_acc + p

        o_ref[0, :, lo:lo + head_dim] = jnp.dot(
            p.astype(COMPUTE_DTYPE), v,
            preferred_element_type=jnp.float32).astype(o_ref.dtype)

    # Head-averaged attention weights (need_weights=True, average_attn_weights=True).
    w_ref[0] = (w_acc * (1.0 / heads)).astype(w_ref.dtype)


# ----------------------------- kernel wrappers ------------------------------

def tiled_linear(x, w, b=None, residual=None, gelu=False, out_dtype=None):
    """Tiled x @ w with optional fused bias / QuickGELU / residual add."""
    M, K = x.shape
    N = w.shape[1]
    out_dtype = out_dtype or ACT_DTYPE
    tm = _row_tile(M)
    tn = _tile(N, _TN, 128)
    tk = _tile(K, _TK, 128)
    grid = (pl.cdiv(M, tm), N // tn, K // tk)

    in_specs = [pl.BlockSpec((tm, tk), lambda i, j, k: (i, k)),
                pl.BlockSpec((tk, tn), lambda i, j, k: (k, j))]
    args = [x, w]
    if b is not None:
        in_specs.append(pl.BlockSpec((1, tn), lambda i, j, k: (0, j)))
        args.append(b.reshape(1, N))
    if residual is not None:
        in_specs.append(pl.BlockSpec((tm, tn), lambda i, j, k: (i, j)))
        args.append(residual)

    kernel = _make_tiled_matmul_kernel(b is not None, residual is not None, gelu)
    bytes_acc = (x.size * x.dtype.itemsize + w.size * w.dtype.itemsize
                 + 2 * M * N * jnp.dtype(out_dtype).itemsize)
    cost = pl.CostEstimate(flops=2 * M * N * K,
                           transcendentals=M * N if gelu else 0,
                           bytes_accessed=bytes_acc)
    return pl.pallas_call(
        kernel,
        out_shape=jax.ShapeDtypeStruct((M, N), out_dtype),
        grid_spec=pltpu.PrefetchScalarGridSpec(
            num_scalar_prefetch=0,
            grid=grid,
            in_specs=in_specs,
            out_specs=pl.BlockSpec((tm, tn), lambda i, j, k: (i, j)),
            scratch_shapes=[pltpu.VMEM((tm, tn), jnp.float32)]),
        compiler_params=pltpu.CompilerParams(
            dimension_semantics=("parallel", "parallel", "arbitrary"),
            vmem_limit_bytes=_vmem_limit_bytes()),
        cost_estimate=cost,
    )(*args)


def ln_linear(x, g, bln, w, b=None, gelu=False, out_dtype=None):
    """Fused LayerNorm + Linear (+ bias) (+ QuickGELU).  K (=D) kept whole per block."""
    M, D = x.shape
    N = w.shape[1]
    out_dtype = out_dtype or ACT_DTYPE
    tm = _row_tile(M)
    tn = _tile(N, _TN, 128)
    grid = (pl.cdiv(M, tm), N // tn)

    in_specs = [pl.BlockSpec((tm, D), lambda i, j: (i, 0)),
                pl.BlockSpec((1, D), lambda i, j: (0, 0)),
                pl.BlockSpec((1, D), lambda i, j: (0, 0)),
                pl.BlockSpec((D, tn), lambda i, j: (0, j))]
    args = [x, g.reshape(1, D), bln.reshape(1, D), w]
    if b is not None:
        in_specs.append(pl.BlockSpec((1, tn), lambda i, j: (0, j)))
        args.append(b.reshape(1, N))

    kernel = _make_ln_linear_kernel(b is not None, gelu)
    bytes_acc = (x.size * x.dtype.itemsize + w.size * w.dtype.itemsize
                 + M * N * jnp.dtype(out_dtype).itemsize)
    cost = pl.CostEstimate(flops=2 * M * N * D + 10 * M * D,
                           transcendentals=(M * N if gelu else 0) + M,
                           bytes_accessed=bytes_acc)
    return pl.pallas_call(
        kernel,
        out_shape=jax.ShapeDtypeStruct((M, N), out_dtype),
        grid_spec=pltpu.PrefetchScalarGridSpec(
            num_scalar_prefetch=0,
            grid=grid,
            in_specs=in_specs,
            out_specs=pl.BlockSpec((tm, tn), lambda i, j: (i, j)),
            scratch_shapes=[pltpu.VMEM((tm, D), COMPUTE_DTYPE)]),
        compiler_params=pltpu.CompilerParams(
            # N axis is "arbitrary": the normalized-row cache requires j in-order.
            dimension_semantics=("parallel", "arbitrary"),
            vmem_limit_bytes=_vmem_limit_bytes()),
        cost_estimate=cost,
    )(*args)


def layernorm(x2d, g, b):
    """Standalone LayerNorm, row-tiled (used only for ln_pre)."""
    M, D = x2d.shape
    tm = _row_tile(M)
    grid = (pl.cdiv(M, tm),)
    return pl.pallas_call(
        _layernorm_kernel,
        out_shape=jax.ShapeDtypeStruct((M, D), x2d.dtype),
        grid=grid,
        in_specs=[pl.BlockSpec((tm, D), lambda i: (i, 0)),
                  pl.BlockSpec((1, D), lambda i: (0, 0)),
                  pl.BlockSpec((1, D), lambda i: (0, 0))],
        out_specs=pl.BlockSpec((tm, D), lambda i: (i, 0)),
        compiler_params=pltpu.CompilerParams(
            dimension_semantics=("parallel",),
            vmem_limit_bytes=_vmem_limit_bytes()),
    )(x2d, g.reshape(1, D), b.reshape(1, D))


def attention(qkv, *, heads, scale):
    """qkv: (B, L, 3*D) with columns [Q | K | V] (per-head lane slices inside each D).

    Returns out (B, L, D) in ACT_DTYPE and head-averaged probs (B, L, L) in f32."""
    B, L, threeD = qkv.shape
    D = threeD // 3
    hd = D // heads
    kernel = functools.partial(_attention_kernel, scale=scale, heads=heads, head_dim=hd)
    bytes_acc = (qkv.size * qkv.dtype.itemsize
                 + B * L * D * jnp.dtype(ACT_DTYPE).itemsize + B * L * L * 4)
    cost = pl.CostEstimate(flops=4 * B * heads * L * L * hd,
                           transcendentals=B * heads * L * L,
                           bytes_accessed=bytes_acc)
    return pl.pallas_call(
        kernel,
        out_shape=(jax.ShapeDtypeStruct((B, L, D), ACT_DTYPE),
                   jax.ShapeDtypeStruct((B, L, L), jnp.float32)),
        grid=(B,),
        in_specs=[pl.BlockSpec((1, L, threeD), lambda b: (b, 0, 0))],
        out_specs=(pl.BlockSpec((1, L, D), lambda b: (b, 0, 0)),
                   pl.BlockSpec((1, L, L), lambda b: (b, 0, 0))),
        compiler_params=pltpu.CompilerParams(
            dimension_semantics=("parallel",),
            vmem_limit_bytes=_vmem_limit_bytes()),
        cost_estimate=cost,
    )(qkv)


# ------------------------------ parameters ---------------------------------

def init_params(key, *, input_resolution, patch_size, width, layers, heads, output_dim):
    del heads  # only used at forward time
    n_keys = 4 + 8 * layers
    keys = iter(jax.random.split(key, n_keys))
    scale = width ** (-0.5)
    n_patches = (input_resolution // patch_size) ** 2

    def nrm(shape, s=0.02):
        return (s * jax.random.normal(next(keys), shape)).astype(jnp.float32)

    params = {
        "conv1_w": nrm((width, 3, patch_size, patch_size)),              # (out, in, kh, kw)
        "class_embedding": nrm((width,), scale),
        "positional_embedding": nrm((n_patches + 1, width), scale),
        "ln_pre_g": jnp.ones((width,), jnp.float32),
        "ln_pre_b": jnp.zeros((width,), jnp.float32),
        "ln_post_g": jnp.ones((width,), jnp.float32),
        "ln_post_b": jnp.zeros((width,), jnp.float32),
        "proj": nrm((width, output_dim), scale),
        "blocks": [],
    }
    for _ in range(layers):
        blk = {
            "ln1_g": jnp.ones((width,), jnp.float32),
            "ln1_b": jnp.zeros((width,), jnp.float32),
            "ln2_g": jnp.ones((width,), jnp.float32),
            "ln2_b": jnp.zeros((width,), jnp.float32),
            # weights stored (in, out) so kernels do x @ W directly; qkv columns [Q|K|V]
            "in_proj_w": nrm((width, 3 * width)),
            "in_proj_b": nrm((3 * width,)),
            "out_proj_w": nrm((width, width)),
            "out_proj_b": nrm((width,)),
            "fc_w": nrm((width, 4 * width)),
            "fc_b": nrm((4 * width,)),
            "cproj_w": nrm((4 * width, width)),
            "cproj_b": nrm((width,)),
        }
        params["blocks"].append(blk)
    return params


# ------------------------------ forward pass --------------------------------

def visual_transformer_forward(x, params, *, patch_size, heads):
    """x: (B, 3, H, W) NCHW.  Returns (features (B, output_dim), [attn_weights (B, L, L)])."""
    B, C, H, W = x.shape
    D = params["conv1_w"].shape[0]
    ps = patch_size
    Hp, Wp = H // ps, W // ps

    cast_w = lambda a: a.astype(COMPUTE_DTYPE)   # bf16 weight operands for the MXU

    # conv1 (kernel = stride = patch_size, no bias) == patchify + tiled matmul
    patches = (x.reshape(B, C, Hp, ps, Wp, ps)
                 .transpose(0, 2, 4, 1, 3, 5)
                 .reshape(B * Hp * Wp, C * ps * ps)).astype(ACT_DTYPE)
    w_patch = cast_w(params["conv1_w"].reshape(D, C * ps * ps).T)        # (C*ps*ps, D)
    tokens = tiled_linear(patches, w_patch).reshape(B, Hp * Wp, D)

    cls = jnp.broadcast_to(
        params["class_embedding"].astype(ACT_DTYPE).reshape(1, 1, D), (B, 1, D))
    xt = jnp.concatenate([cls, tokens], axis=1)                          # (B, L, D)
    xt = xt + params["positional_embedding"].astype(ACT_DTYPE)[None]
    L = xt.shape[1]

    # ln_pre (standalone, row-tiled; f32 stats, bf16 output)
    x2d = layernorm(xt.reshape(B * L, D), params["ln_pre_g"], params["ln_pre_b"])

    hd = D // heads
    scale = hd ** (-0.5)
    attn_weights = []
    for blk in params["blocks"]:
        # --- multi-head self-attention: fused LN1 + QKV projection ---
        qkv = ln_linear(x2d, blk["ln1_g"], blk["ln1_b"],
                        cast_w(blk["in_proj_w"]), blk["in_proj_b"])      # (B*L, 3D)
        # No XLA head transpose: feed (B, L, 3D) directly, split heads in-kernel.
        o, w = attention(qkv.reshape(B, L, 3 * D), heads=heads, scale=scale)
        attn_weights.append(w)
        # out_proj + residual add, fused (tiled with K reduction + accumulator)
        x2d = tiled_linear(o.reshape(B * L, D), cast_w(blk["out_proj_w"]),
                           blk["out_proj_b"], residual=x2d)

        # --- MLP: fused LN2 + c_fc + QuickGELU, then c_proj + residual ---
        h2 = ln_linear(x2d, blk["ln2_g"], blk["ln2_b"],
                       cast_w(blk["fc_w"]), blk["fc_b"], gelu=True)      # (B*L, 4D)
        x2d = tiled_linear(h2, cast_w(blk["cproj_w"]), blk["cproj_b"], residual=x2d)

    xt = x2d.reshape(B, L, D)
    cls_tok = xt[:, 0, :]                                                # (B, D)
    # fused ln_post + final projection (no bias); features returned in f32
    out = ln_linear(cls_tok, params["ln_post_g"], params["ln_post_b"],
                    cast_w(params["proj"]), out_dtype=jnp.float32)
    return out, attn_weights


# --------------------------------- main --------------------------------------

if __name__ == "__main__":
    # small config consistent with the module
    input_resolution = 16
    patch_size = 8
    width = 32
    layers = 2
    heads = 4
    output_dim = 16
    batch = 2

    key = jax.random.PRNGKey(0)
    k_params, k_input = jax.random.split(key)
    params = init_params(k_params,
                         input_resolution=input_resolution, patch_size=patch_size,
                         width=width, layers=layers, heads=heads, output_dim=output_dim)

    x = jax.random.normal(k_input, (batch, 3, input_resolution, input_resolution),
                          dtype=jnp.float32)

    feats, weights = visual_transformer_forward(x, params,
                                                patch_size=patch_size, heads=heads)
    jax.block_until_ready(feats)
    for w in weights:
        jax.block_until_ready(w)

    assert feats.shape == (batch, output_dim)
    n_tokens = (input_resolution // patch_size) ** 2 + 1
    assert all(w.shape == (batch, n_tokens, n_tokens) for w in weights)
    print("KERNEL_OK")
</pallas_src>

<mosaic_0001>
module attributes {stable_mosaic.version = 11 : i64} {
  func.func @kernel(%arg0: i32, %arg1: i32, %arg2: i32, %arg3: memref<8x192xbf16, #tpu.memory_space<vmem>>, %arg4: memref<192x32xbf16, #tpu.memory_space<vmem>>, %arg5: memref<8x32xbf16, #tpu.memory_space<vmem>>, %arg6: memref<8x32xf32, #tpu.memory_space<vmem>>) attributes {dimension_semantics = [#tpu.dimension_semantics<parallel>, #tpu.dimension_semantics<parallel>, #tpu.dimension_semantics<arbitrary>], iteration_bounds = array<i64: 1, 1, 1>, scalar_prefetch = 0 : i64, scratch_operands = 1 : i64, tpu.core_type = #tpu.core_type<tc>, window_params = [{transform_indices = @transform_0, window_bounds = array<i64: 8, 192>}, {transform_indices = @transform_1, window_bounds = array<i64: 192, 32>}, {transform_indices = @transform_2, window_bounds = array<i64: 8, 32>}]} {
    %c0_i32 = arith.constant 0 : i32
    %0 = arith.cmpi eq, %arg2, %c0_i32 : i32
    %1 = arith.extui %0 : i1 to i32
    %c0_i32_0 = arith.constant 0 : i32
    %2 = arith.cmpi ne, %1, %c0_i32_0 : i32
    scf.if %2 {
      %cst_10 = arith.constant 0.000000e+00 : f32
      %12 = vector.broadcast %cst_10 : f32 to vector<8x32xf32>
      %c0_11 = arith.constant 0 : index
      %c0_12 = arith.constant 0 : index
      %13 = vector.load %arg6[%c0_11, %c0_12] : memref<8x32xf32, #tpu.memory_space<vmem>>, vector<8x32xf32>
      tpu.vector_store %arg6[%c0_11, %c0_12], %12 {strides = array<i32>} : memref<8x32xf32, #tpu.memory_space<vmem>>, vector<8x32xf32>,
    } else {
    }
    %c0 = arith.constant 0 : index
    %c0_1 = arith.constant 0 : index
    %3 = vector.load %arg6[%c0, %c0_1] : memref<8x32xf32, #tpu.memory_space<vmem>>, vector<8x32xf32>
    %c0_2 = arith.constant 0 : index
    %c0_3 = arith.constant 0 : index
    %4 = vector.load %arg3[%c0_2, %c0_3] : memref<8x192xbf16, #tpu.memory_space<vmem>>, vector<8x192xbf16>
    %c0_4 = arith.constant 0 : index
    %c0_5 = arith.constant 0 : index
    %5 = vector.load %arg4[%c0_4, %c0_5] : memref<192x32xbf16, #tpu.memory_space<vmem>>, vector<192x32xbf16>
    %cst = arith.constant dense<0.000000e+00> : vector<8x32xf32>
    %6 = tpu.matmul %4, %5, %cst {dimension_numbers = #tpu.dot_dimension_numbers<[1], [0], [0], [1], [0, 0, 1, 1], [], []>} : vector<8x192xbf16>, vector<192x32xbf16>, vector<8x32xf32> -> vector<8x32xf32>
    %7 = arith.addf %3, %6 : vector<8x32xf32>
    %c0_6 = arith.constant 0 : index
    %c0_7 = arith.constant 0 : index
    %8 = vector.load %arg6[%c0_6, %c0_7] : memref<8x32xf32, #tpu.memory_space<vmem>>, vector<8x32xf32>
    tpu.vector_store %arg6[%c0_6, %c0_7], %7 {strides = array<i32>} : memref<8x32xf32, #tpu.memory_space<vmem>>, vector<8x32xf32>,
    %c0_i32_8 = arith.constant 0 : i32
    %9 = arith.cmpi eq, %arg2, %c0_i32_8 : i32
    %10 = arith.extui %9 : i1 to i32
    %c0_i32_9 = arith.constant 0 : i32
    %11 = arith.cmpi ne, %10, %c0_i32_9 : i32
    scf.if %11 {
      %c0_10 = arith.constant 0 : index
      %c0_11 = arith.constant 0 : index
      %12 = vector.load %arg6[%c0_10, %c0_11] : memref<8x32xf32, #tpu.memory_space<vmem>>, vector<8x32xf32>
      %13 = arith.truncf %12 : vector<8x32xf32> to vector<8x32xbf16>
      %c0_12 = arith.constant 0 : index
      %c0_13 = arith.constant 0 : index
      %14 = vector.load %arg5[%c0_12, %c0_13] : memref<8x32xbf16, #tpu.memory_space<vmem>>, vector<8x32xbf16>
      tpu.vector_store %arg5[%c0_12, %c0_13], %13 {strides = array<i32>} : memref<8x32xbf16, #tpu.memory_space<vmem>>, vector<8x32xbf16>,
    } else {
    }
    return
  }
  func.func @transform_0(%arg0: i32, %arg1: i32, %arg2: i32) -> (i32, i32) {
    %c0_i32 = arith.constant 0 : i32
    return %arg0, %arg2 : i32, i32
  }
  func.func @transform_1(%arg0: i32, %arg1: i32, %arg2: i32) -> (i32, i32) {
    %c0_i32 = arith.constant 0 : i32
    return %arg2, %arg1 : i32, i32
  }
  func.func @transform_2(%arg0: i32, %arg1: i32, %arg2: i32) -> (i32, i32) {
    %c0_i32 = arith.constant 0 : i32
    return %arg0, %arg1 : i32, i32
  }
}

</mosaic_0001>

<llo_original>
// kernel: tpu_custom_call.1
$region0: #{tpu_custom_call.1}
  #allocation0 [shape = 'u32[]', space=smem, size = 0x4, offset = 0x4, fixed_abs, tag = 'smem constant byte address 0x4 - core index']
  #allocation1 [shape = 'u32[144,128]{1,0:T(1,128)}', space=vmem, size = 0x12000, scoped, tag = 'internal scratch']
  #allocation2 [shape = 'f32[8,32]{1,0:T(8,128)}', space=vmem, size = 0x1000, scoped, tag = 'scratch operand']
  %s0 = inlined_call_operand.vmem [shape: bf16[8,192], index: 0, kind: input, shape index: {}]
  %s1 = inlined_call_operand.vmem [shape: bf16[192,32], index: 1, kind: input, shape index: {}]
  %s2 = inlined_call_operand.hbm [shape: bf16[8,32], index: 2, kind: output, shape index: {}]
  %s3 = sld [smem:[#allocation0]]
  $region26: #{tpu_custom_call.1} parent=0
    _
  %s5 = ssub.s32 1, %s3
  %s6 = scalar_select 0, %s5, %s3
  $region1: #{tpu_custom_call.1} parent=0
    #allocation3 [shape = 'u8[2048]{0}', space=vmem, size = 0x800, scoped, tag = 'output window, operand 0, single buffered']
    #allocation4 [shape = 's32[1]{0}', space=sflag, size = 0x4, scoped, tag = 'scoped memory for tpu_custom_call.1']
    %7 = vsyncpa [#allocation4], 0
    // Predicated region
    $region2: #{tpu_custom_call.1} parent=1 // pred_check
      _
    $region3: #{tpu_custom_call.1} parent=1 // pred_check_branch
      %9 = sbr.rel (0) target = $region5
    $region4: #{tpu_custom_call.1} parent=1 // pred_region
      _
    $region5: #{tpu_custom_call.1} parent=1 // pred_fallthru
      _
    // Predicated region
    $region6: #{tpu_custom_call.1} parent=1 // pred_check
      _
    $region7: #{tpu_custom_call.1} parent=1 // pred_check_branch
      %11 = sbr.rel (0) target = $region9
    $region8: #{tpu_custom_call.1} parent=1 // pred_region
      _
    $region9: #{tpu_custom_call.1} parent=1 // pred_fallthru
      _
    %p13 = scmp.eq.s32.totalorder 0, 0
    // Predicated region
    $region10: #{tpu_custom_call.1} parent=1 // pred_check
      %p14 = pneg %p13
    $region11: #{tpu_custom_call.1} parent=1 // pred_check_branch
      %16 = sbr.rel (%p14) target = $region13
    $region12: #{tpu_custom_call.1} parent=1 // pred_region
      %vm17 = vcmask 261120
      %18 = vst.msk [vmem:[#allocation2] sm:$0xff] %vm17, 0.0
    $region13: #{tpu_custom_call.1} parent=1 // pred_fallthru
      _
    %v19 = vld [vmem:[#allocation2] sm:$0xff]
    %v20 = vld [vmem:[%s0] sm:$0xff]
    %v21 = vld [vmem:[%s1] sm:$0xf]
    %v22 = vld [vmem:[%s1 + $0x4] sm:$0xf]
    %v23 = vld [vmem:[%s1 + $0x8] sm:$0xf]
    %v24 = vld [vmem:[%s1 + $0xc] sm:$0xf]
    %v25 = vld [vmem:[%s1 + $0x10] sm:$0xf]
    %v26 = vld [vmem:[%s1 + $0x14] sm:$0xf]
    %v27 = vld [vmem:[%s1 + $0x18] sm:$0xf]
    %v28 = vld [vmem:[%s1 + $0x1c] sm:$0xf]
    %v29 = vld [vmem:[%s1 + $0x20] sm:$0xf]
    %v30 = vld [vmem:[%s1 + $0x24] sm:$0xf]
    %v31 = vld [vmem:[%s1 + $0x28] sm:$0xf]
    %v32 = vld [vmem:[%s1 + $0x2c] sm:$0xf]
    %v33 = vld [vmem:[%s1 + $0x30] sm:$0xf]
    %v34 = vld [vmem:[%s1 + $0x34] sm:$0xf]
    %v35 = vld [vmem:[%s1 + $0x38] sm:$0xf]
    %v36 = vld [vmem:[%s1 + $0x3c] sm:$0xf]
    %v37 = vld [vmem:[%s1 + $0x40] sm:$0xf]
    %v38 = vld [vmem:[%s1 + $0x44] sm:$0xf]
    %v39 = vld [vmem:[%s1 + $0x48] sm:$0xf]
    %v40 = vld [vmem:[%s1 + $0x4c] sm:$0xf]
    %v41 = vld [vmem:[%s1 + $0x50] sm:$0xf]
    %v42 = vld [vmem:[%s1 + $0x54] sm:$0xf]
    %v43 = vld [vmem:[%s1 + $0x58] sm:$0xf]
    %v44 = vld [vmem:[%s1 + $0x5c] sm:$0xf]
    %v46 = vunpack.c.l.b16 %v20
    %v47 = vunpack.c.h.b16 %v20
    %v48 = vpack.c.b16 %v46, %v46
    %v49 = vpack.c.b16 %v47, %v47
    %v75 = vunpack.c.l.b16 %v21
    %v76 = vunpack.c.l.b16 %v22
    %v77 = vunpack.c.l.b16 %v23
    %v78 = vunpack.c.l.b16 %v24
    %v79 = vunpack.c.l.b16 %v25
    %v80 = vunpack.c.l.b16 %v26
    %v81 = vunpack.c.l.b16 %v27
    %v82 = vunpack.c.l.b16 %v28
    %v83 = vunpack.c.l.b16 %v29
    %v84 = vunpack.c.l.b16 %v30
    %v85 = vunpack.c.l.b16 %v31
    %v86 = vunpack.c.l.b16 %v32
    %v87 = vunpack.c.l.b16 %v33
    %v88 = vunpack.c.l.b16 %v34
    %v89 = vunpack.c.l.b16 %v35
    %v90 = vunpack.c.l.b16 %v36
    %v91 = vunpack.c.l.b16 %v37
    %v92 = vunpack.c.l.b16 %v38
    %v93 = vunpack.c.l.b16 %v39
    %v94 = vunpack.c.l.b16 %v40
    %v95 = vunpack.c.l.b16 %v41
    %v96 = vunpack.c.l.b16 %v42
    %v97 = vunpack.c.l.b16 %v43
    %v98 = vunpack.c.l.b16 %v44
    %v99 = vpack.c.b16 %v76, %v75
    %v100 = vpack.c.b16 %v78, %v77
    %v101 = vpack.c.b16 %v80, %v79
    %v102 = vpack.c.b16 %v82, %v81
    %v103 = vpack.c.b16 %v84, %v83
    %v104 = vpack.c.b16 %v86, %v85
    %v105 = vpack.c.b16 %v88, %v87
    %v106 = vpack.c.b16 %v90, %v89
    %v107 = vpack.c.b16 %v92, %v91
    %v108 = vpack.c.b16 %v94, %v93
    %v109 = vpack.c.b16 %v96, %v95
    %v110 = vpack.c.b16 %v98, %v97
    %vm123 = vcmask 523264
    %v125 = vsel %vm123, %v49, 0
    %127 = vmatprep.subr.bf16.mxu0 0
    %128 = vmatpush1.bf16.msra.mxu0 %v99
    %129 = vmatprep.subr.bf16.mxu0 0
    %130 = vmatpush1.bf16.msra.mxu0 %v100
    %131 = vmatprep.subr.bf16.mxu0 0
    %132 = vmatpush1.bf16.msra.mxu0 %v101
    %133 = vmatprep.subr.bf16.mxu0 0
    %134 = vmatpush1.bf16.msra.mxu0 %v102
    %135 = vmatprep.subr.bf16.mxu0 0
    %136 = vmatpush1.bf16.msra.mxu0 %v103
    %137 = vmatprep.subr.bf16.mxu0 0
    %138 = vmatpush1.bf16.msra.mxu0 %v104
    %139 = vmatprep.subr.bf16.mxu0 0
    %140 = vmatpush1.bf16.msra.mxu0 %v105
    %141 = vmatprep.subr.bf16.mxu0 0
    %142 = vmatpush1.bf16.msra.mxu0 %v106
    %143 = vmatprep.subr.bf16.mxu0 0
    %144 = vmatpush1.bf16.msra.mxu0 %v107
    %145 = vmatprep.subr.bf16.mxu0 0
    %146 = vmatpush1.bf16.msra.mxu0 %v108
    %147 = vmatprep.subr.bf16.mxu0 0
    %148 = vmatpush1.bf16.msra.mxu0 %v109
    %149 = vmatprep.subr.bf16.mxu0 0
    %150 = vmatpush1.bf16.msra.mxu0 %v110
    %151 = vmatprep.subr.bf16.mxu0 0
    %152 = vmatpush1.bf16.msra.mxu0 0
    %153 = vmatprep.subr.bf16.mxu0 0
    %154 = vmatpush1.bf16.msra.mxu0 0
    %155 = vmatprep.subr.bf16.mxu0 0
    %156 = vmatpush1.bf16.msra.mxu0 0
    %157 = vmatprep.subr.bf16.mxu0 0
    %158 = vmatpush1.bf16.msra.mxu0 0
    %159 = vmatprep.mubr.bf16.mxu0 %v125
    %160 = vmatmul.mubr.bf16.gmra.mrb[0].mxu0 %v48
    %v161 = vpop.f32.mrb[0].mxu0
    %v162 = vadd.f32 0.0, %v161
    %v163 = vpop.f32.mrb[0].mxu0
    %v164 = vpop.f32.mrb[0].mxu0
    %v165 = vpop.f32.mrb[0].mxu0
    %166 = vdwg.mxu0
    %v167 = vadd.f32 %v19, %v162
    %vm168 = vcmask 261120
    %169 = vst.msk [vmem:[#allocation2] sm:$0xff] %vm168, %v167
    // Predicated region
    $region14: #{tpu_custom_call.1} parent=1 // pred_check
      %p170 = pneg %p13
    $region15: #{tpu_custom_call.1} parent=1 // pred_check_branch
      %172 = sbr.rel (%p170) target = $region17
    $region16: #{tpu_custom_call.1} parent=1 // pred_region
      %v173 = vld [vmem:[#allocation2] sm:$0xff]
      %v174 = vpack.c.bf16 %v173, %v173
      %vm175 = vcmask 257024
      %176 = vst.msk [vmem:[#allocation3] sm:$0xf] %vm175, %v174
    $region17: #{tpu_custom_call.1} parent=1 // pred_fallthru
      _
    // Predicated region
    $region18: #{tpu_custom_call.1} parent=1 // pred_check
      _
    $region19: #{tpu_custom_call.1} parent=1 // pred_check_branch
      %178 = sbr.rel (0) target = $region21
    $region20: #{tpu_custom_call.1} parent=1 // pred_region
      %s180 = ssub.s32 64, 64
      %181 = vsyncadd [#allocation4], %s180
      %s183 = sshll.u32 [#allocation3], 4
      %s184 = int_to_ptr.vmem [resolvable:$true] %s183
      %186 = dma.vmem_to_hbm [thread:$0]  %s184, 64, %s2, [#allocation4]
    $region21: #{tpu_custom_call.1} parent=1 // pred_fallthru
      _
    // Predicated region
    $region22: #{tpu_custom_call.1} parent=1 // pred_check
      _
    $region23: #{tpu_custom_call.1} parent=1 // pred_check_branch
      %188 = sbr.rel (0) target = $region25
    $region24: #{tpu_custom_call.1} parent=1 // pred_region
      %189 = dma.done [#allocation4], 64
    $region25: #{tpu_custom_call.1} parent=1 // pred_fallthru
      _
    %190 = vsyncpa [#allocation4], 1

</llo_original>
